<compile_context>
chip_gen: v7x
topology: tpu7x:2x2x1
jax: 0.10.0
libtpu: 0.0.40
codegen_flags: <defaults>
</compile_context>

<pallas_src>
import functools

import jax
import jax.numpy as jnp
from jax.experimental import pallas as pl
from jax.experimental.pallas import tpu as pltpu


# ----------------------------------------------------------------------------
# Wrapper-side data plumbing (pure layout work, no compute hoisting)
# ----------------------------------------------------------------------------
def geo_cyclic_pad(x, pad):
    """x: (B, C, H, W) -> (B, C, H+2p, W+2p) spherical padding."""
    _, _, _, w = x.shape
    top = jnp.roll(jnp.flip(x[:, :, :pad, :], axis=2), w // 2, axis=3)
    bot = jnp.roll(jnp.flip(x[:, :, -pad:, :], axis=2), w // 2, axis=3)
    xp = jnp.concatenate([top, x, bot], axis=2)
    xp = jnp.concatenate([xp[:, :, :, -pad:], xp, xp[:, :, :, :pad]], axis=3)
    return xp


def _im2col_bias(xp, k, h, w):
    """(B, C, H+2p, W+2p) -> (B, C*k*k + 1, H*W); last row is ones (bias fold)."""
    b, c, _, _ = xp.shape
    taps = [xp[:, :, dy:dy + h, dx:dx + w] for dy in range(k) for dx in range(k)]
    p = jnp.stack(taps, axis=2).reshape(b, c * k * k, h * w)  # row = c*k*k + dy*k + dx
    ones = jnp.ones((b, 1, h * w), p.dtype)
    return jnp.concatenate([p, ones], axis=1)


def _fold_bias(conv_w, conv_b):
    """(C_out, C_in, k, k), (C_out,) -> (C_out, C_in*k*k + 1) with bias column."""
    c_out = conv_w.shape[0]
    return jnp.concatenate([conv_w.reshape(c_out, -1), conv_b.reshape(c_out, 1)],
                           axis=1)


# ----------------------------------------------------------------------------
# Pallas kernels: one fused (conv -> [LayerNorm] -> SiLU) per batch sample
# ----------------------------------------------------------------------------
def _conv_ln_silu_kernel(p_ref, w_ref, g_ref, beta_ref, o_ref, *, eps):
    # p_ref:    (1, Kd, HW)   im2col patches (+ones row), bf16/f32, lane-dense
    # w_ref:    (C, Kd)       conv weight with bias column folded in
    # g_ref:    (C, HW)       LayerNorm gamma   (f32)
    # beta_ref: (C, HW)       LayerNorm beta    (f32)
    # o_ref:    (1, C, HW)    f32 output
    y = jnp.dot(w_ref[...], p_ref[0], preferred_element_type=jnp.float32)  # (C, HW)

    # Single-pass LayerNorm stats over the whole (C, H, W) sample.
    n = y.shape[0] * y.shape[1]
    s = jnp.sum(y)
    ss = jnp.sum(y * y)
    mean = s / n
    var = ss / n - mean * mean
    xhat = (y - mean) * jax.lax.rsqrt(var + eps)
    z = xhat * g_ref[...] + beta_ref[...]

    o_ref[0] = z * jax.nn.sigmoid(z)          # SiLU


def _conv_silu_kernel(p_ref, w_ref, o_ref):
    # p_ref: (1, Kd, HW); w_ref: (C_out, Kd); o_ref: (1, C_out, HW)
    y = jnp.dot(w_ref[...], p_ref[0], preferred_element_type=jnp.float32)
    o_ref[0] = y * jax.nn.sigmoid(y)          # SiLU


def clp_velocity_net(x, params, *, kernel_size=3, eps=1e-5,
                     matmul_dtype=jnp.bfloat16):
    """CLP(double_conv=True): x (B,C,H,W) -> velocities (B, 2C, H, W)."""
    b, c_in, h, w = x.shape
    pad = kernel_size // 2
    hw = h * w
    w1, b1 = params["w1"], params["b1"]
    w2, b2 = params["w2"], params["b2"]
    c_mid = w1.shape[0]
    c_out = w2.shape[0]

    # ---------- stage 1: geo-pad -> conv3x3 -> LayerNorm -> SiLU ----------
    p1 = _im2col_bias(geo_cyclic_pad(x, pad), kernel_size, h, w).astype(matmul_dtype)
    wa1 = _fold_bias(w1, b1).astype(matmul_dtype)
    kd1 = p1.shape[1]

    y1 = pl.pallas_call(
        functools.partial(_conv_ln_silu_kernel, eps=eps),
        out_shape=jax.ShapeDtypeStruct((b, c_mid, hw), jnp.float32),
        grid_spec=pltpu.PrefetchScalarGridSpec(
            num_scalar_prefetch=0,
            grid=(b,),
            in_specs=[
                pl.BlockSpec((1, kd1, hw), lambda i: (i, 0, 0)),
                # Grid-invariant operands: constant index maps -> fetched once.
                pl.BlockSpec((c_mid, kd1), lambda i: (0, 0)),
                pl.BlockSpec((c_mid, hw), lambda i: (0, 0)),
                pl.BlockSpec((c_mid, hw), lambda i: (0, 0)),
            ],
            out_specs=pl.BlockSpec((1, c_mid, hw), lambda i: (i, 0, 0)),
        ),
        compiler_params=pltpu.CompilerParams(
            dimension_semantics=("parallel",)),
    )(p1, wa1, params["g1"].reshape(c_mid, hw), params["beta1"].reshape(c_mid, hw))

    # ---------- stage 2: geo-pad -> conv3x3 -> SiLU ----------
    p2 = _im2col_bias(geo_cyclic_pad(y1.reshape(b, c_mid, h, w), pad),
                      kernel_size, h, w).astype(matmul_dtype)
    wa2 = _fold_bias(w2, b2).astype(matmul_dtype)
    kd2 = p2.shape[1]

    y2 = pl.pallas_call(
        _conv_silu_kernel,
        out_shape=jax.ShapeDtypeStruct((b, c_out, hw), jnp.float32),
        grid_spec=pltpu.PrefetchScalarGridSpec(
            num_scalar_prefetch=0,
            grid=(b,),
            in_specs=[
                pl.BlockSpec((1, kd2, hw), lambda i: (i, 0, 0)),
                pl.BlockSpec((c_out, kd2), lambda i: (0, 0)),
            ],
            out_specs=pl.BlockSpec((1, c_out, hw), lambda i: (i, 0, 0)),
        ),
        compiler_params=pltpu.CompilerParams(
            dimension_semantics=("parallel",)),
    )(p2, wa2)

    return y2.reshape(b, c_out, h, w)


# ----------------------------------------------------------------------------
# Semi-Lagrangian advection glue (elementwise trig + bicubic gather) — JAX
# ----------------------------------------------------------------------------
def _transform_to_latlon(lat_prime, lon_prime, lat_p, lon_p):
    sin_lat_prime = jnp.sin(lat_prime)
    cos_lat_prime = jnp.cos(lat_prime)
    sin_lon_prime = jnp.sin(lon_prime)
    cos_lon_prime = jnp.cos(lon_prime)
    sin_lat_p = jnp.sin(lat_p)
    cos_lat_p = jnp.cos(lat_p)
    sin_lat = sin_lat_prime * cos_lat_p + cos_lat_prime * cos_lon_prime * sin_lat_p
    lat = jnp.arcsin(jnp.clip(sin_lat, -1.0 + 1e-7, 1.0 - 1e-7))
    num = cos_lat_prime * sin_lon_prime
    den = cos_lat_prime * cos_lon_prime * cos_lat_p - sin_lat_prime * sin_lat_p
    lon = lon_p + jnp.arctan2(num, den)
    lon = jnp.remainder(lon + 2.0 * jnp.pi, 2.0 * jnp.pi)
    return lat, lon


def _cubic_weights(t, a=-0.75):
    """PyTorch bicubic convolution weights (A = -0.75) for fractional offset t."""
    def cc1(x):
        return ((a + 2.0) * x - (a + 3.0)) * x * x + 1.0

    def cc2(x):
        return ((a * x - 5.0 * a) * x + 8.0 * a) * x - 4.0 * a

    return cc2(t + 1.0), cc1(t), cc1(1.0 - t), cc2(2.0 - t)


def _grid_sample_bicubic_border(img, gx, gy):
    """torch.grid_sample(mode='bicubic', align_corners=True, padding_mode='border').
    img: (N, Hp, Wp); gx, gy: (N, H, W) in [-1, 1] -> (N, H, W)."""
    n, hp, wp = img.shape
    ix = (gx + 1.0) * 0.5 * (wp - 1)
    iy = (gy + 1.0) * 0.5 * (hp - 1)
    ix0 = jnp.floor(ix)
    iy0 = jnp.floor(iy)
    wx = _cubic_weights(ix - ix0)
    wy = _cubic_weights(iy - iy0)
    ix0 = ix0.astype(jnp.int32)
    iy0 = iy0.astype(jnp.int32)
    flat = img.reshape(n, hp * wp)
    out = jnp.zeros_like(ix)
    for m in range(4):
        yi = jnp.clip(iy0 + (m - 1), 0, hp - 1)
        row = jnp.zeros_like(ix)
        for k in range(4):
            xi = jnp.clip(ix0 + (k - 1), 0, wp - 1)
            idx = (yi * wp + xi).reshape(n, -1)
            vals = jnp.take_along_axis(flat, idx, axis=1).reshape(ix.shape)
            row = row + wx[k] * vals
        out = out + wy[m] * row
    return out


def _advect(hidden, velocities, lat_grid, lon_grid, dt):
    """Departure-point computation + bicubic interpolation of geo-padded features."""
    b, c, h, w = hidden.shape
    u = velocities[:, :c]          # view(B,2,C,H,W).transpose(1,2)[:, :, 0]
    v = velocities[:, c:]          # view(B,2,C,H,W).transpose(1,2)[:, :, 1]
    lon_prime = -u * dt
    lat_prime = -v * dt
    lat_p = jnp.broadcast_to(lat_grid[:, None, :, :], (b, c, h, w))
    lon_p = jnp.broadcast_to(lon_grid[:, None, :, :], (b, c, h, w))
    lat_dep, lon_dep = _transform_to_latlon(lat_prime, lon_prime, lat_p, lon_p)

    grid_x = jnp.remainder(lon_dep / jnp.pi, 2.0) - 1.0
    grid_y = 2.0 * lat_dep / jnp.pi
    grid_y = jnp.where(grid_y < -1.0, -(2.0 + grid_y), grid_y)
    grid_y = jnp.where(grid_y > 1.0, 2.0 - grid_y, grid_y)

    padded = geo_cyclic_pad(hidden, 1).reshape(b * c, h + 2, w + 2)
    # TODO(synk): bicubic grid_sample is a per-pixel data-dependent gather with no
    # clean Pallas TPU equivalent (would need per-tap DMA or one-hot matmuls); kept
    # as vectorized JAX.
    out = _grid_sample_bicubic_border(
        padded, grid_x.reshape(b * c, h, w), grid_y.reshape(b * c, h, w))
    return out.reshape(b, c, h, w)


# ----------------------------------------------------------------------------
# Full module forward (variational=False) + pure-JAX reference
# ----------------------------------------------------------------------------
def neural_semi_lagrangian(hidden, lat_grid, lon_grid, dt, params, *,
                           kernel_size=3, eps=1e-5, matmul_dtype=jnp.bfloat16):
    # TODO(synk): variational=True branch (VariationalCLP + KL loss) not implemented;
    # module is exercised with variational=False.
    vel = clp_velocity_net(hidden, params, kernel_size=kernel_size, eps=eps,
                           matmul_dtype=matmul_dtype)
    return _advect(hidden, vel, lat_grid, lon_grid, dt)


def neural_semi_lagrangian_reference(hidden, lat_grid, lon_grid, dt, params, *,
                                     kernel_size=3, eps=1e-5,
                                     matmul_dtype=jnp.bfloat16):
    """Plain-JAX reference (lax.conv velocity net, mirrors the kernel's bf16 MXU
    input policy so only reduction-order differences remain)."""
    pad = kernel_size // 2

    def conv(x, cw, cb):
        xp = geo_cyclic_pad(x, pad)
        y = jax.lax.conv_general_dilated(
            xp.astype(matmul_dtype), cw.astype(matmul_dtype),
            window_strides=(1, 1), padding="VALID",
            dimension_numbers=("NCHW", "OIHW", "NCHW"),
            preferred_element_type=jnp.float32)
        return y + cb.astype(matmul_dtype).astype(jnp.float32).reshape(1, -1, 1, 1)

    y = conv(hidden, params["w1"], params["b1"])
    mean = jnp.mean(y, axis=(1, 2, 3), keepdims=True)
    var = jnp.mean((y - mean) ** 2, axis=(1, 2, 3), keepdims=True)
    y = (y - mean) * jax.lax.rsqrt(var + eps)
    y = y * params["g1"][None] + params["beta1"][None]
    y = y * jax.nn.sigmoid(y)

    vel = conv(y, params["w2"], params["b2"])
    vel = vel * jax.nn.sigmoid(vel)
    return _advect(hidden, vel, lat_grid, lon_grid, dt)


# ----------------------------------------------------------------------------
if __name__ == "__main__":
    # Small shapes consistent with the module: hidden_dim=4, mesh_size=(16,16).
    B, C, H, W, K = 2, 4, 16, 16, 3
    DT = 0.05

    key = jax.random.PRNGKey(0)
    kx, k1w, k1b, kg, kbeta, k2w, k2b = jax.random.split(key, 7)

    hidden = jax.random.normal(kx, (B, C, H, W), dtype=jnp.float32)
    params = dict(
        w1=0.1 * jax.random.normal(k1w, (C, C, K, K), dtype=jnp.float32),
        b1=0.1 * jax.random.normal(k1b, (C,), dtype=jnp.float32),
        g1=1.0 + 0.1 * jax.random.normal(kg, (C, H, W), dtype=jnp.float32),
        beta1=0.1 * jax.random.normal(kbeta, (C, H, W), dtype=jnp.float32),
        w2=0.1 * jax.random.normal(k2w, (2 * C, C, K, K), dtype=jnp.float32),
        b2=0.1 * jax.random.normal(k2b, (2 * C,), dtype=jnp.float32),
    )

    lats = jnp.pi / 2 - (jnp.arange(H, dtype=jnp.float32) + 0.5) * jnp.pi / H
    lons = 2.0 * jnp.pi * jnp.arange(W, dtype=jnp.float32) / W
    lat_grid = jnp.broadcast_to(lats[None, :, None], (B, H, W))
    lon_grid = jnp.broadcast_to(lons[None, None, :], (B, H, W))

    out = neural_semi_lagrangian(hidden, lat_grid, lon_grid, DT, params,
                                 kernel_size=K)
    out = jax.block_until_ready(out)

    ref = jax.block_until_ready(
        neural_semi_lagrangian_reference(hidden, lat_grid, lon_grid, DT, params,
                                         kernel_size=K))

    assert out.shape == (B, C, H, W)
    # Tolerance covers bf16 MXU-input accumulation-order differences, amplified by
    # the near-pole coordinate transform sensitivity.
    max_err = float(jnp.max(jnp.abs(out - ref)))
    assert jnp.allclose(out, ref, rtol=1e-2, atol=1e-2), max_err

    print("KERNEL_OK")
</pallas_src>

<mosaic_0001>
module attributes {stable_mosaic.version = 11 : i64} {
  func.func @_conv_ln_silu_kernel(%arg0: i32, %arg1: memref<1x37x256xbf16, #tpu.memory_space<vmem>>, %arg2: memref<4x37xbf16, #tpu.memory_space<vmem>>, %arg3: memref<4x256xf32, #tpu.memory_space<vmem>>, %arg4: memref<4x256xf32, #tpu.memory_space<vmem>>, %arg5: memref<1x4x256xf32, #tpu.memory_space<vmem>>) attributes {dimension_semantics = [#tpu.dimension_semantics<parallel>], iteration_bounds = array<i64: 2>, scalar_prefetch = 0 : i64, scratch_operands = 0 : i64, tpu.core_type = #tpu.core_type<tc>, window_params = [{transform_indices = @transform_0, window_bounds = array<i64: 1, 37, 256>}, {pipeline_mode = #tpu.pipeline_mode<synchronous>, transform_indices = @transform_1, window_bounds = array<i64: 4, 37>}, {pipeline_mode = #tpu.pipeline_mode<synchronous>, transform_indices = @transform_2, window_bounds = array<i64: 4, 256>}, {pipeline_mode = #tpu.pipeline_mode<synchronous>, transform_indices = @transform_3, window_bounds = array<i64: 4, 256>}, {transform_indices = @transform_4, window_bounds = array<i64: 1, 4, 256>}]} {
    %c0 = arith.constant 0 : index
    %c0_0 = arith.constant 0 : index
    %0 = vector.load %arg2[%c0, %c0_0] : memref<4x37xbf16, #tpu.memory_space<vmem>>, vector<4x37xbf16>
    %c0_1 = arith.constant 0 : index
    %c0_2 = arith.constant 0 : index
    %c0_3 = arith.constant 0 : index
    %1 = vector.load %arg1[%c0_1, %c0_2, %c0_3] : memref<1x37x256xbf16, #tpu.memory_space<vmem>>, vector<1x37x256xbf16>
    %2 = vector.shape_cast %1 : vector<1x37x256xbf16> to vector<37x256xbf16>
    %cst = arith.constant dense<0.000000e+00> : vector<4x256xf32>
    %3 = tpu.matmul %0, %2, %cst {dimension_numbers = #tpu.dot_dimension_numbers<[1], [0], [0], [1], [0, 0, 1, 1], [], []>} : vector<4x37xbf16>, vector<37x256xbf16>, vector<4x256xf32> -> vector<4x256xf32>
    %4 = vector.shape_cast %3 : vector<4x256xf32> to vector<1x4x256xf32>
    %cst_4 = arith.constant dense<0.000000e+00> : vector<1xf32>
    %5 = vector.multi_reduction <add>, %4, %cst_4 [1, 2] : vector<1x4x256xf32> to vector<1xf32>
    %6 = vector.shape_cast %5 : vector<1xf32> to vector<1x1x1xf32>
    %7 = vector.extract %6[0, 0, 0] : f32 from vector<1x1x1xf32>
    %8 = arith.mulf %3, %3 : vector<4x256xf32>
    %9 = vector.shape_cast %8 : vector<4x256xf32> to vector<1x4x256xf32>
    %cst_5 = arith.constant dense<0.000000e+00> : vector<1xf32>
    %10 = vector.multi_reduction <add>, %9, %cst_5 [1, 2] : vector<1x4x256xf32> to vector<1xf32>
    %11 = vector.shape_cast %10 : vector<1xf32> to vector<1x1x1xf32>
    %12 = vector.extract %11[0, 0, 0] : f32 from vector<1x1x1xf32>
    %cst_6 = arith.constant 1.024000e+03 : f32
    %13 = arith.divf %7, %cst_6 : f32
    %cst_7 = arith.constant 1.024000e+03 : f32
    %14 = arith.divf %12, %cst_7 : f32
    %15 = arith.mulf %13, %13 : f32
    %16 = arith.subf %14, %15 : f32
    %17 = vector.broadcast %13 : f32 to vector<4x256xf32>
    %18 = arith.subf %3, %17 : vector<4x256xf32>
    %cst_8 = arith.constant 9.99999974E-6 : f32
    %19 = arith.addf %16, %cst_8 : f32
    %20 = math.rsqrt %19 : f32
    %21 = vector.broadcast %20 : f32 to vector<4x256xf32>
    %22 = arith.mulf %18, %21 : vector<4x256xf32>
    %c0_9 = arith.constant 0 : index
    %c0_10 = arith.constant 0 : index
    %23 = vector.load %arg3[%c0_9, %c0_10] : memref<4x256xf32, #tpu.memory_space<vmem>>, vector<4x256xf32>
    %24 = arith.mulf %22, %23 : vector<4x256xf32>
    %c0_11 = arith.constant 0 : index
    %c0_12 = arith.constant 0 : index
    %25 = vector.load %arg4[%c0_11, %c0_12] : memref<4x256xf32, #tpu.memory_space<vmem>>, vector<4x256xf32>
    %26 = arith.addf %24, %25 : vector<4x256xf32>
    %27 = arith.negf %26 : vector<4x256xf32>
    %28 = math.exp %27 : vector<4x256xf32>
    %cst_13 = arith.constant 1.000000e+00 : f32
    %29 = vector.broadcast %cst_13 : f32 to vector<4x256xf32>
    %30 = arith.addf %29, %28 : vector<4x256xf32>
    %31 = arith.divf %29, %30 : vector<4x256xf32>
    %32 = arith.mulf %26, %31 : vector<4x256xf32>
    %c0_14 = arith.constant 0 : index
    %c0_15 = arith.constant 0 : index
    %c0_16 = arith.constant 0 : index
    %33 = vector.load %arg5[%c0_14, %c0_15, %c0_16] : memref<1x4x256xf32, #tpu.memory_space<vmem>>, vector<1x4x256xf32>
    %34 = vector.shape_cast %33 : vector<1x4x256xf32> to vector<4x256xf32>
    %35 = vector.shape_cast %32 : vector<4x256xf32> to vector<1x4x256xf32>
    tpu.vector_store %arg5[%c0_14, %c0_15, %c0_16], %35 {strides = array<i32>} : memref<1x4x256xf32, #tpu.memory_space<vmem>>, vector<1x4x256xf32>,
    return
  }
  func.func @transform_0(%arg0: i32) -> (i32, i32, i32) {
    %c0_i32 = arith.constant 0 : i32
    %c0_i32_0 = arith.constant 0 : i32
    %c0_i32_1 = arith.constant 0 : i32
    return %arg0, %c0_i32, %c0_i32_0 : i32, i32, i32
  }
  func.func @transform_1(%arg0: i32) -> (i32, i32) {
    %c0_i32 = arith.constant 0 : i32
    %c0_i32_0 = arith.constant 0 : i32
    %c0_i32_1 = arith.constant 0 : i32
    return %c0_i32, %c0_i32_0 : i32, i32
  }
  func.func @transform_2(%arg0: i32) -> (i32, i32) {
    %c0_i32 = arith.constant 0 : i32
    %c0_i32_0 = arith.constant 0 : i32
    %c0_i32_1 = arith.constant 0 : i32
    return %c0_i32, %c0_i32_0 : i32, i32
  }
  func.func @transform_3(%arg0: i32) -> (i32, i32) {
    %c0_i32 = arith.constant 0 : i32
    %c0_i32_0 = arith.constant 0 : i32
    %c0_i32_1 = arith.constant 0 : i32
    return %c0_i32, %c0_i32_0 : i32, i32
  }
  func.func @transform_4(%arg0: i32) -> (i32, i32, i32) {
    %c0_i32 = arith.constant 0 : i32
    %c0_i32_0 = arith.constant 0 : i32
    %c0_i32_1 = arith.constant 0 : i32
    return %arg0, %c0_i32, %c0_i32_0 : i32, i32, i32
  }
}

</mosaic_0001>

<llo_original>
// kernel: tpu_custom_call.1
$region0: #{tpu_custom_call.1}
  #allocation0 [shape = 'u32[]', space=smem, size = 0x4, offset = 0x4, fixed_abs, tag = 'smem constant byte address 0x4 - core index']
  #allocation1 [shape = 'u32[144,128]{1,0:T(1,128)}', space=vmem, size = 0x12000, scoped, tag = 'internal scratch']
  %s0 = inlined_call_operand.vmem [shape: bf16[2,37,256], index: 0, kind: input, shape index: {}]
  %s1 = inlined_call_operand.vmem [shape: bf16[4,37], index: 1, kind: input, shape index: {}]
  %s2 = inlined_call_operand.vmem [shape: f32[4,256], index: 2, kind: input, shape index: {}]
  %s3 = inlined_call_operand.vmem [shape: f32[4,256], index: 3, kind: input, shape index: {}]
  %s4 = inlined_call_operand.hbm [shape: f32[2,4,256], index: 4, kind: output, shape index: {}]
  %s5 = sld [smem:[#allocation0]]
  $region49: #{tpu_custom_call.1} parent=0
    _
  %s7 = ssub.s32 1, %s5
  %s8 = scalar_select 0, %s7, %s5
  $region1: #{tpu_custom_call.1} parent=0
    #allocation2 [shape = 'u8[8192]{0}', space=vmem, size = 0x2000, scoped, tag = 'output window, operand 0']
    #allocation3 [shape = 's32[2]{0}', space=sflag, size = 0x8, scoped, tag = 'scoped memory for tpu_custom_call.1']
    %9 = vsyncpa [#allocation3], 0
    %s10 = scalar_lea.sflag [#allocation3], 1
    %11 = vsyncpa %s10, 0
    loop: start=0, step=1, limit=4
    $region2: #{tpu_custom_call.1} parent=1 // loop_pre_header
      _
    $region3: #{tpu_custom_call.1} parent=1 // loop_header
      %s13 = sphi 0, %s17
      %p14 = scmp.ge.s32.totalorder %s13, 4
      %s23 = sphi 0, %s25
      %s26 = sphi 0, %s23
      %s27 = sphi 0, %s26
      %s43 = sphi 0, %s27
      %s47 = sphi 0, %s47
      %s49 = sphi 0, %s47
      %s50 = sphi 0, %s49
      %s64 = sphi 0, %s50
      %s68 = sphi 0, %s68
      %s70 = sphi 0, %s68
      %s71 = sphi 0, %s70
      %s85 = sphi 0, %s71
      %s89 = sphi 0, %s89
      %s91 = sphi 0, %s89
      %s92 = sphi 0, %s91
      %s106 = sphi 0, %s92
      %s112 = sphi 0, %s114
      %s115 = sphi 0, %s112
      %s116 = sphi 0, %s115
      %s132 = sphi 0, %s116
    $region4: #{tpu_custom_call.1} parent=1 // loop_header_branch
      %16 = sbr.rel (%p14) target = $region8
    $region5: #{tpu_custom_call.1} parent=1 // loop_body
      %s18 = ssub.s32 %s13, 1
      %s19 = ssub.s32 %s13, 2
      %s20 = sadd.s32 %s13, 1
      %s21 = ssub.s32 %s13, %s20
      %p22 = scmp.eq.s32.totalorder %s21, 0
      %s24 = sadd.s32 %s23, 1
      %s25 = scalar_select %p22, %s23, %s24
      %p28 = pneg %p22
      %p29 = scmp.eq.s32.totalorder %s13, 1
      %p30 = por %p28, %p29
      %p31 = scmp.ne.s32.totalorder %s23, %s26
      %p32 = scmp.eq.s32.totalorder %s13, 0
      %p33 = por %p31, %p32
      %p34 = scmp.ne.s32.totalorder %s23, %s26
      %p35 = scmp.eq.s32.totalorder %s18, 1
      %p36 = por %p34, %p35
      %p37 = scmp.ne.s32.totalorder %s26, %s27
      %p38 = scmp.eq.s32.totalorder %s18, 0
      %p39 = por %p37, %p38
      %p40 = scmp.ne.s32.totalorder %s26, %s27
      %p41 = scmp.eq.s32.totalorder %s19, 1
      %p42 = por %p40, %p41
      %p44 = scmp.ne.s32.totalorder %s27, %s43
      %p45 = scmp.eq.s32.totalorder %s19, 0
      %p46 = por %p44, %p45
      %s48 = sadd.s32 %s47, 1
      %p51 = scmp.eq.s32.totalorder %s13, 1
      %p52 = scmp.ne.s32.totalorder %s47, %s49
      %p53 = scmp.eq.s32.totalorder %s13, 0
      %p54 = por %p52, %p53
      %p55 = scmp.ne.s32.totalorder %s47, %s49
      %p56 = scmp.eq.s32.totalorder %s18, 1
      %p57 = por %p55, %p56
      %p58 = scmp.ne.s32.totalorder %s49, %s50
      %p59 = scmp.eq.s32.totalorder %s18, 0
      %p60 = por %p58, %p59
      %p61 = scmp.ne.s32.totalorder %s49, %s50
      %p62 = scmp.eq.s32.totalorder %s19, 1
      %p63 = por %p61, %p62
      %p65 = scmp.ne.s32.totalorder %s50, %s64
      %p66 = scmp.eq.s32.totalorder %s19, 0
      %p67 = por %p65, %p66
      %s69 = sadd.s32 %s68, 1
      %p72 = scmp.eq.s32.totalorder %s13, 1
      %p73 = scmp.ne.s32.totalorder %s68, %s70
      %p74 = scmp.eq.s32.totalorder %s13, 0
      %p75 = por %p73, %p74
      %p76 = scmp.ne.s32.totalorder %s68, %s70
      %p77 = scmp.eq.s32.totalorder %s18, 1
      %p78 = por %p76, %p77
      %p79 = scmp.ne.s32.totalorder %s70, %s71
      %p80 = scmp.eq.s32.totalorder %s18, 0
      %p81 = por %p79, %p80
      %p82 = scmp.ne.s32.totalorder %s70, %s71
      %p83 = scmp.eq.s32.totalorder %s19, 1
      %p84 = por %p82, %p83
      %p86 = scmp.ne.s32.totalorder %s71, %s85
      %p87 = scmp.eq.s32.totalorder %s19, 0
      %p88 = por %p86, %p87
      %s90 = sadd.s32 %s89, 1
      %p93 = scmp.eq.s32.totalorder %s13, 1
      %p94 = scmp.ne.s32.totalorder %s89, %s91
      %p95 = scmp.eq.s32.totalorder %s13, 0
      %p96 = por %p94, %p95
      %p97 = scmp.ne.s32.totalorder %s89, %s91
      %p98 = scmp.eq.s32.totalorder %s18, 1
      %p99 = por %p97, %p98
      %p100 = scmp.ne.s32.totalorder %s91, %s92
      %p101 = scmp.eq.s32.totalorder %s18, 0
      %p102 = por %p100, %p101
      %p103 = scmp.ne.s32.totalorder %s91, %s92
      %p104 = scmp.eq.s32.totalorder %s19, 1
      %p105 = por %p103, %p104
      %p107 = scmp.ne.s32.totalorder %s92, %s106
      %p108 = scmp.eq.s32.totalorder %s19, 0
      %p109 = por %p107, %p108
      %s110 = ssub.s32 %s13, %s20
      %p111 = scmp.eq.s32.totalorder %s110, 0
      %s113 = sadd.s32 %s112, 1
      %s114 = scalar_select %p111, %s112, %s113
      %p117 = pneg %p111
      %p118 = scmp.eq.s32.totalorder %s13, 1
      %p119 = por %p117, %p118
      %p120 = scmp.ne.s32.totalorder %s112, %s115
      %p121 = scmp.eq.s32.totalorder %s13, 0
      %p122 = por %p120, %p121
      %p123 = scmp.ne.s32.totalorder %s112, %s115
      %p124 = scmp.eq.s32.totalorder %s18, 1
      %p125 = por %p123, %p124
      %p126 = scmp.ne.s32.totalorder %s115, %s116
      %p127 = scmp.eq.s32.totalorder %s18, 0
      %p128 = por %p126, %p127
      %p129 = scmp.ne.s32.totalorder %s115, %s116
      %p130 = scmp.eq.s32.totalorder %s19, 1
      %p131 = por %p129, %p130
      %p133 = scmp.ne.s32.totalorder %s116, %s132
      %p134 = scmp.eq.s32.totalorder %s19, 0
      %p135 = por %p133, %p134
      %p136 = scmp.le.s32.totalorder 1, %s13
      %p137 = scmp.lt.s32.totalorder %s13, 3
      %p138 = pnand %p136, %p137
      %p139 = pneg %p138
      // Predicated region
      $region9: #{tpu_custom_call.1} parent=5 // pred_check
        _
      $region10: #{tpu_custom_call.1} parent=5 // pred_check_branch
        %141 = sbr.rel (%p138) target = $region12
      $region11: #{tpu_custom_call.1} parent=5 // pred_region
        %s142 = ssub.s32 %s13, 1
        // Predicated region
        $region13: #{tpu_custom_call.1} parent=11 // pred_check
          %p143 = pneg %p60
        $region14: #{tpu_custom_call.1} parent=11 // pred_check_branch
          %145 = sbr.rel (%p143) target = $region16
        $region15: #{tpu_custom_call.1} parent=11 // pred_region
          _
        $region16: #{tpu_custom_call.1} parent=11 // pred_fallthru
          _
        // Predicated region
        $region17: #{tpu_custom_call.1} parent=11 // pred_check
          %p146 = pneg %p81
        $region18: #{tpu_custom_call.1} parent=11 // pred_check_branch
          %148 = sbr.rel (%p146) target = $region20
        $region19: #{tpu_custom_call.1} parent=11 // pred_region
          _
        $region20: #{tpu_custom_call.1} parent=11 // pred_fallthru
          _
        // Predicated region
        $region21: #{tpu_custom_call.1} parent=11 // pred_check
          %p149 = pneg %p102
        $region22: #{tpu_custom_call.1} parent=11 // pred_check_branch
          %151 = sbr.rel (%p149) target = $region24
        $region23: #{tpu_custom_call.1} parent=11 // pred_region
          _
        $region24: #{tpu_custom_call.1} parent=11 // pred_fallthru
          _
      $region12: #{tpu_custom_call.1} parent=5 // pred_fallthru
        _
      %p152 = scmp.lt.s32.totalorder %s13, 2
      // Predicated region
      $region25: #{tpu_custom_call.1} parent=5 // pred_check
        %p153 = pneg %p152
      $region26: #{tpu_custom_call.1} parent=5 // pred_check_branch
        %155 = sbr.rel (%p153) target = $region28
      $region27: #{tpu_custom_call.1} parent=5 // pred_region
        // Predicated region
        $region29: #{tpu_custom_call.1} parent=27 // pred_check
          %p156 = pneg %p33
        $region30: #{tpu_custom_call.1} parent=27 // pred_check_branch
          %158 = sbr.rel (%p156) target = $region32
        $region31: #{tpu_custom_call.1} parent=27 // pred_region
          %p159 = scmp.lt.s32.totalorder %s13, 1
          %s160 = scalar_select %p159, %s13, 1
          %s161 = smul.addr %s160, 10
          %s162 = smul.addr %s161, 4
          %s163 = scalar_lea.vmem %s0, %s162
        $region32: #{tpu_custom_call.1} parent=27 // pred_fallthru
          _
      $region28: #{tpu_custom_call.1} parent=5 // pred_fallthru
        _
      %p164 = scmp.le.s32.totalorder 1, %s13
      %p165 = scmp.lt.s32.totalorder %s13, 3
      %p166 = pnand %p164, %p165
      %p167 = pneg %p166
      // Predicated region
      $region33: #{tpu_custom_call.1} parent=5 // pred_check
        _
      $region34: #{tpu_custom_call.1} parent=5 // pred_check_branch
        %169 = sbr.rel (%p166) target = $region36
      $region35: #{tpu_custom_call.1} parent=5 // pred_region
        %s170 = ssub.s32 %s13, 1
        %p171 = scmp.lt.s32.totalorder %s18, 1
        %s172 = scalar_select %p171, %s18, 1
        %s173 = smul.addr %s172, 10
        %s174 = smul.addr %s173, 4
        %s175 = scalar_lea.vmem %s0, %s174
        %p176 = pneg %p39
        %p177 = pneg %p36
        %p178 = pneg %p60
        %p179 = pneg %p57
        %p180 = pneg %p81
        %p181 = pneg %p78
        %p182 = pneg %p102
        %p183 = pneg %p99
        %p184 = pneg %p128
        %p185 = pneg %p125
        %s186 = sand.u32 %s115, 1
        %s187 = scalar_lea.sflag [#allocation3], %s186
        %s188 = sand.u32 %s115, 1
        %s189 = smul.addr %s188, 8
        %s190 = scalar_lea.vmem [#allocation2], %s189
        %p191 = scmp.lt.s32.totalorder %s18, 1
        %s192 = scalar_select %p191, %s18, 1
        %s193 = smul.addr %s192, 10
        %s194 = smul.addr %s193, 4
        %s195 = scalar_lea.vmem %s0, %s194
        %v197 = vld [vmem:[%s1] sm:$0x3]
        %v198 = vld [vmem:[%s195] sm:$0xff]
        %v199 = vld [vmem:[%s195 + $0x8] sm:$0xff]
        %v200 = vld [vmem:[%s195 + $0x10] sm:$0xff]
        %v201 = vld [vmem:[%s195 + $0x18] sm:$0xff]
        %v202 = vld [vmem:[%s195 + $0x20] sm:$0x77]
        %v208 = vunpack.c.l.b16 %v198
        %v209 = vunpack.c.h.b16 %v198
        %v210 = vunpack.c.l.b16 %v199
        %v211 = vunpack.c.h.b16 %v199
        %v212 = vunpack.c.l.b16 %v200
        %v213 = vunpack.c.h.b16 %v200
        %v214 = vunpack.c.l.b16 %v201
        %v215 = vunpack.c.h.b16 %v201
        %v216 = vunpack.c.l.b16 %v202
        %v217 = vunpack.c.h.b16 %v202
        %v218 = vpack.c.b16 %v210, %v208
        %v219 = vpack.c.b16 %v211, %v209
        %v220 = vpack.c.b16 %v214, %v212
        %v221 = vpack.c.b16 %v215, %v213
        %v222 = vpack.c.b16 %v216, %v216
        %v223 = vpack.c.b16 %v217, %v217
        %vm228 = vcmask 302080
        %v230 = vsel %vm228, %v197, 0
        %vm232 = vcmask 1041408
        %vm233 = vcmask 1042432
        %v234 = vsel %vm232, 4294967295, 65535
        %v235 = vsel %vm233, %v234, 0
        %v237 = vand.u32 %v222, %v235
        %v240 = vand.u32 %v223, %v235
        %242 = vmatprep.subr.bf16.mxu0 %v219
        %243 = vmatpush1.bf16.msra.mxu0 %v218
        %244 = vmatprep.subr.bf16.mxu0 %v221
        %245 = vmatpush1.bf16.msra.mxu0 %v220
        %246 = vmatprep.subr.bf16.mxu0 %v240
        %247 = vmatpush1.bf16.msra.mxu0 %v237
        %248 = vmatprep.subr.bf16.mxu0 0
        %249 = vmatpush1.bf16.msra.mxu0 0
        %250 = vmatprep.subr.bf16.mxu0 0
        %251 = vmatpush1.bf16.msra.mxu0 0
        %252 = vmatprep.subr.bf16.mxu0 0
        %253 = vmatpush1.bf16.msra.mxu0 0
        %254 = vmatprep.subr.bf16.mxu0 0
        %255 = vmatpush1.bf16.msra.mxu0 0
        %256 = vmatprep.subr.bf16.mxu0 0
        %257 = vmatpush1.bf16.msra.mxu0 0
        %258 = vmatprep.subr.bf16.mxu0 0
        %259 = vmatpush1.bf16.msra.mxu0 0
        %260 = vmatprep.subr.bf16.mxu0 0
        %261 = vmatpush1.bf16.msra.mxu0 0
        %262 = vmatprep.subr.bf16.mxu0 0
        %263 = vmatpush1.bf16.msra.mxu0 0
        %264 = vmatprep.subr.bf16.mxu0 0
        %265 = vmatpush1.bf16.msra.mxu0 0
        %266 = vmatprep.subr.bf16.mxu0 0
        %267 = vmatpush1.bf16.msra.mxu0 0
        %268 = vmatprep.subr.bf16.mxu0 0
        %269 = vmatpush1.bf16.msra.mxu0 0
        %270 = vmatprep.subr.bf16.mxu0 0
        %271 = vmatpush1.bf16.msra.mxu0 0
        %272 = vmatprep.subr.bf16.mxu0 0
        %273 = vmatpush1.bf16.msra.mxu0 0
        %274 = vmatprep.mubr.bf16.mxu0 0
        %275 = vmatmul.mubr.bf16.gmra.mrb[0].mxu0 %v230
        %v276 = vpop.f32.mrb[0].mxu0
        %v277 = vadd.f32 0.0, %v276
        %v278 = vpop.f32.mrb[0].mxu0
        %v279 = vadd.f32 0.0, %v278
        %v280 = vpop.f32.mrb[0].mxu0
        %v281 = vpop.f32.mrb[0].mxu0
        %282 = vdwg.mxu0
        %vm283 = vcmask 1043456
        %v284 = vsel %vm283, %v277, 0.0
        %v285 = vsel %vm283, %v279, 0.0
        %v286 = vadd.f32 %v284, %v285
        %287 = vadd.xlane.f32.xlu0 %v286
        %v288 = vpop.xlane.xlu0 %287
        %v289 = vrot.slane %v288, 4
        %v290 = vadd.f32 %v288, %v289
        %v291 = vrot.slane %v290, 2
        %v292 = vadd.f32 %v290, %v291
        %v293 = vrot.slane %v292, 1
        %v294 = vadd.f32 %v292, %v293
        %s295 = vtos %v294
        %v296 = vmul.f32 %v277, %v277
        %v297 = vmul.f32 %v279, %v279
        %v298 = vsel %vm283, %v296, 0.0
        %v299 = vsel %vm283, %v297, 0.0
        %v300 = vadd.f32 %v298, %v299
        %301 = vadd.xlane.f32.xlu0 %v300
        %v302 = vpop.xlane.xlu0 %301
        %v303 = vrot.slane %v302, 4
        %v304 = vadd.f32 %v302, %v303
        %v305 = vrot.slane %v304, 2
        %v306 = vadd.f32 %v304, %v305
        %v307 = vrot.slane %v306, 1
        %v308 = vadd.f32 %v306, %v307
        %s309 = vtos %v308
        %v310 = vrcp.pop 1024.0
        %s311 = vtos %v310
        %s312 = smul.f32 %s295, %s311
        %v313 = vrcp.pop 1024.0
        %s314 = vtos %v313
        %s315 = smul.f32 %s309, %s314
        %s316 = smul.f32 %s312, %s312
        %s317 = ssub.f32 %s315, %s316
        %v318 = vstv %s312
        %v319 = vsub.f32 %v277, %v318
        %v320 = vsub.f32 %v279, %v318
        %s321 = sadd.f32 %s317, 1e-05
        %v322 = vstv %s321
        %v323 = vrsqrt.pop %v322
        %s324 = vtos %v323
        %v325 = vstv %s324
        %v326 = vmul.f32 %v319, %v325
        %v327 = vmul.f32 %v320, %v325
        %v328 = vld [vmem:[%s2] sm:$0xff]
        %v330 = vcombine.high %v328, %v328
        %v332 = vmul.f32 %v326, %v328
        %v333 = vmul.f32 %v327, %v330
        %v334 = vld [vmem:[%s3] sm:$0xff]
        %v336 = vcombine.high %v334, %v334
        %v338 = vadd.f32 %v332, %v334
        %v339 = vadd.f32 %v333, %v336
        %v340 = vxor.u32 %v338, 2147483648
        %v341 = vxor.u32 %v339, 2147483648
        %v342 = vmul.f32 %v340, 1.442695
        %v343 = vpow.pop %v342
        %v344 = vmul.f32 %v341, 1.442695
        %v345 = vpow.pop %v344
        %v346 = vadd.f32 %v343, 1.0
        %v347 = vadd.f32 %v345, 1.0
        %v348 = vrcp.pop %v346
        %v349 = vmul.f32 1.0, %v348
        %v350 = vrcp.pop %v347
        %v351 = vmul.f32 1.0, %v350
        %v352 = vmul.f32 %v338, %v349
        %v353 = vmul.f32 %v339, %v351
        %v356 = vcombine.low %v352, %v353
        %358 = vst [vmem:[%s190] sm:$0xff] %v356
        %s359 = sand.u32 %s115, 1
        %s360 = scalar_lea.sflag [#allocation3], %s359
        %s361 = sand.u32 %s115, 1
        %s362 = smul.addr %s361, 8
        %s363 = scalar_lea.vmem [#allocation2], %s362
        // Predicated region
        $region37: #{tpu_custom_call.1} parent=35 // pred_check
          %p364 = pneg %p125
        $region38: #{tpu_custom_call.1} parent=35 // pred_check_branch
          %366 = sbr.rel (%p364) target = $region40
        $region39: #{tpu_custom_call.1} parent=35 // pred_region
          %s368 = ssub.s32 128, 128
          %369 = vsyncadd %s360, %s368
          %s370 = smul.addr %s18, 2
          %s371 = smul.addr %s370, 64
          %s372 = scalar_lea.hbm %s4, %s371
          %s374 = sshll.u32 %s363, 4
          %s375 = int_to_ptr.vmem [resolvable:$true] %s374
          %377 = dma.vmem_to_hbm [thread:$0]  %s375, 128, %s372, %s360
        $region40: #{tpu_custom_call.1} parent=35 // pred_fallthru
          _
      $region36: #{tpu_custom_call.1} parent=5 // pred_fallthru
        _
      %p378 = scmp.le.s32.totalorder 2, %s13
      // Predicated region
      $region41: #{tpu_custom_call.1} parent=5 // pred_check
        %p379 = pneg %p378
      $region42: #{tpu_custom_call.1} parent=5 // pred_check_branch
        %381 = sbr.rel (%p379) target = $region44
      $region43: #{tpu_custom_call.1} parent=5 // pred_region
        %s382 = ssub.s32 %s13, 2
        // Predicated region
        $region45: #{tpu_custom_call.1} parent=43 // pred_check
          %p383 = pneg %p131
        $region46: #{tpu_custom_call.1} parent=43 // pred_check_branch
          %385 = sbr.rel (%p383) target = $region48
        $region47: #{tpu_custom_call.1} parent=43 // pred_region
          %s386 = sand.u32 %s116, 1
          %s387 = scalar_lea.sflag [#allocation3], %s386
          %s388 = sand.u32 %s116, 1
          %s389 = smul.addr %s388, 8
          %s390 = scalar_lea.vmem [#allocation2], %s389
          %391 = dma.done %s387, 128
        $region48: #{tpu_custom_call.1} parent=43 // pred_fallthru
          _
      $region44: #{tpu_custom_call.1} parent=5 // pred_fallthru
        _
    $region6: #{tpu_custom_call.1} parent=1 // loop_footer
      %s17 = sadd.s32 1, %s13
    $region7: #{tpu_custom_call.1} parent=1 // loop_footer_branch
      %12 = sbr.rel target = $region3
    $region8: #{tpu_custom_call.1} parent=1 // loop_exit
      _
    %392 = vsyncpa [#allocation3], 1
    %s393 = scalar_lea.sflag [#allocation3], 1
    %394 = vsyncpa %s393, 1

</llo_original>
